<compile_context>
chip_gen: v5e
topology: v5e:2x2
jax: 0.10.0
libtpu: 0.0.40
codegen_flags: <defaults>
</compile_context>

<pallas_src>
import numpy as np
import jax
import jax.numpy as jnp
from jax import lax
from jax.experimental import pallas as pl
from jax.experimental.pallas import tpu as pltpu

_LANE = 1024            # lanes per slab column
_SUB = 8                # sublanes per row-group
_GROUP = _SUB * _LANE   # elements per vreg-aligned (8, 1024) group
_NUM_CHUNKS = 2         # leading "parallel" grid axis (dual-TC on v7x)


def _cdiv(a, b):
    return -(-a // b)


def _mse_tiling(total_elems, itemsize):
    """Pick (groups_per_block, steps, padded_groups) for the MSE reduction.

    Targets ~2 MiB per input block per buffer (dtype-aware): measured data puts
    1-4 MiB blocks at ~85%+ of HBM roofline, while the double-buffered
    2-inputs x 2-buffers footprint stays well inside every generation's VMEM
    (v5e's 16 MiB default scoped limit is raised explicitly by the caller).
    Steps/blocks are chosen to minimise padding rather than from a fixed
    divisor list, so awkward sizes never fall back to tiny tiles or to a
    full-extent block."""
    n_groups = max(1, _cdiv(total_elems, _GROUP))
    target_block_bytes = 2 << 20
    budget_groups = max(1, target_block_bytes // (_GROUP * itemsize))
    per_chunk = _cdiv(n_groups, _NUM_CHUNKS)
    steps = _cdiv(per_chunk, budget_groups)
    groups_block = _cdiv(per_chunk, steps)
    padded_groups = _NUM_CHUNKS * steps * groups_block
    return groups_block, steps, padded_groups


def _mse_partial_kernel(rec_ref, tgt_ref, part_ref):
    """Per-chunk partial sum of squared differences.

    part_ref is this chunk's (8, LANE) output block; it is revisited across the
    trailing "arbitrary" grid axis, so it acts as a resident VMEM accumulator.
    Per step only VPU ops are issued (sum over the un-tiled leading axis is a
    plain vreg add); the cross-lane reduce happens once in the finalize kernel.
    """
    @pl.when(pl.program_id(1) == 0)
    def _():
        part_ref[...] = jnp.zeros_like(part_ref)

    # Cast to f32 inside the kernel so bf16/fp16 inputs DMA at native width.
    d = rec_ref[...].astype(jnp.float32) - tgt_ref[...].astype(jnp.float32)
    part_ref[...] += jnp.sum(d * d, axis=0)


def _make_finalize_kernel(latent_dim, batch, log_db, inv_total):
    """latent_dim, batch, log_db = log(d+b), inv_total = 1/numel(rec): static."""
    D, B = latent_dim, batch

    def kernel(part_ref, lat_ref, out_ref):
        # Reconstruction MSE: reduce the per-chunk partial accumulators.
        out_ref[0] = jnp.sum(part_ref[...]) * jnp.float32(inv_total)

        # Latents packed along the leading axis (4, B, D): static leading-index
        # loads are free sublane-block selects for any D (no lane shuffles).
        m = lat_ref[0].astype(jnp.float32)
        lv = lat_ref[1].astype(jnp.float32)
        z = lat_ref[2].astype(jnp.float32)
        zc = lat_ref[3].astype(jnp.float32)

        # KLD (diag Gaussian, reduction='mean' == mean over batch of row sums
        # == flat sum / B).
        kld = jnp.sum((m * m + jnp.exp(lv) - lv - 1.0) * 0.5) * jnp.float32(1.0 / B)

        # Contrast: C = |z z^T|; tr(C) == sum_i ||z_i||^2 (diag of z z^T >= 0),
        # so no iota/eye/trace materialisation is needed.
        xnorm = jnp.sum(z * z, axis=1, keepdims=True)          # (B, 1), reused below
        C = jnp.abs(lax.dot_general(z, z, (((1,), (1,)), ((), ())),
                                    preferred_element_type=jnp.float32))
        contrast = (1.0 - jnp.sum(xnorm) / jnp.sum(C)) * jnp.float32(log_db)

        # Align: 1 - mean( sum((tanh(z)*zc)^2, 1) * rsqrt(|z|^2 |zc|^2) ).
        # rsqrt + multiply routes to the EUP slot instead of VPU sqrt + divide.
        # The PyTorch torch.any(...) all-zero fallback to 1.0 is a device-side
        # select (value-exact; forward pass only).
        ynorm = jnp.sum(zc * zc, axis=1, keepdims=True)
        t = jnp.tanh(z) * zc
        align_val = 1.0 - jnp.sum(jnp.sum(t * t, axis=1, keepdims=True)
                                  * lax.rsqrt(xnorm * ynorm)) * jnp.float32(1.0 / B)
        nonzero = jnp.logical_and(jnp.sum(xnorm) > 0.0, jnp.sum(ynorm) > 0.0)

        out_ref[1] = kld
        out_ref[2] = contrast
        out_ref[3] = jnp.where(nonzero, align_val, jnp.float32(1.0))

    return kernel


def vae_loss_metrics(rec, target, mean, logvar, z, zctx):
    """Returns a (4,) f32 device array: [rec_mse, kld, contrast, align]."""
    total = int(rec.size)
    itemsize = int(jnp.dtype(rec.dtype).itemsize)       # dtype-aware budgeting
    groups_block, steps, padded_groups = _mse_tiling(total, itemsize)

    # Batch-agnostic slab (groups, 8, LANE).  Zero padding (both operands padded
    # identically) is exact for the squared-difference sum; for slab-aligned
    # sizes no pad op (hence no extra copy) is emitted and the reshape is free.
    flat_r = rec.reshape(-1)
    flat_t = target.reshape(-1)
    pad = padded_groups * _GROUP - total
    if pad:
        flat_r = jnp.pad(flat_r, (0, pad))
        flat_t = jnp.pad(flat_t, (0, pad))
    rec_slab = flat_r.reshape(padded_groups, _SUB, _LANE)
    tgt_slab = flat_t.reshape(padded_groups, _SUB, _LANE)

    block_bytes = groups_block * _GROUP * itemsize
    # 2 inputs x 2 buffers + generous headroom for in-kernel f32 temporaries;
    # explicit so v5e's 16 MiB default scoped limit never binds, and bounded so
    # it stays within v7x's 64 MiB per-TC physical VMEM.
    vmem_limit = int(min(4 * block_bytes + (24 << 20), 48 << 20))

    partials = pl.pallas_call(
        _mse_partial_kernel,
        out_shape=jax.ShapeDtypeStruct((_NUM_CHUNKS, _SUB, _LANE), jnp.float32),
        grid=(_NUM_CHUNKS, steps),
        in_specs=[
            pl.BlockSpec((groups_block, _SUB, _LANE),
                         lambda p, i: (p * steps + i, 0, 0)),
            pl.BlockSpec((groups_block, _SUB, _LANE),
                         lambda p, i: (p * steps + i, 0, 0)),
        ],
        # One resident accumulator block per parallel chunk -> safe under
        # megacore sharding of the leading grid axis.
        out_specs=pl.BlockSpec((None, _SUB, _LANE), lambda p, i: (p, 0, 0)),
        compiler_params=pltpu.CompilerParams(
            dimension_semantics=("parallel", "arbitrary"),
            vmem_limit_bytes=vmem_limit),
        cost_estimate=pl.CostEstimate(
            flops=3 * padded_groups * _GROUP,
            transcendentals=0,
            bytes_accessed=2 * padded_groups * _GROUP * itemsize
            + _NUM_CHUNKS * _GROUP * 4),
    )(rec_slab, tgt_slab)

    # Tiny grid-less finalize kernel: reduces the partials, computes the latent
    # metrics once (off the hot path; everything fits trivially in VMEM).
    lat = jnp.stack([mean, logvar, z, zctx], axis=0)     # (4, B, D)
    b, d = z.shape
    finalize = _make_finalize_kernel(d, b, float(np.log(d + b)), 1.0 / float(total))
    return pl.pallas_call(
        finalize,
        out_shape=jax.ShapeDtypeStruct((4,), jnp.float32),
        in_specs=[pl.BlockSpec(memory_space=pltpu.MemorySpace.VMEM),
                  pl.BlockSpec(memory_space=pltpu.MemorySpace.VMEM)],
        out_specs=pl.BlockSpec(memory_space=pltpu.MemorySpace.SMEM),
    )(partials, lat)


class VAELossJax:
    """JAX/Pallas re-implementation of VAELoss.forward.

    keys   : names of the entries of `outputs` (maps name -> index)
    config : {'Reconstruction': w_rec, 'KLD': ..., 'Contrast': ..., 'Align': ...}
    """

    KEYS = ['Reconstruction', 'KLD', 'Contrast', 'Align']

    def __init__(self, keys, config, semantic_dim=0):
        self.keys = keys
        self.semantic_dim = semantic_dim
        init, order, weight = [], [], 1.0
        for key in config:
            if key not in self.KEYS:
                raise Exception(f'Unknown key: {key}')
            if key == 'Reconstruction':
                weight = config[key]
            else:
                init.append(config[key])
                order.append(key)
        self.mixer = jnp.asarray(init, dtype=jnp.float32)
        self.order = order
        self.reconstruction_weight = float(weight)
        # Per-metric exp(weight) factors: all sub-losses init with weight=0.0
        # and non-trainable -> exp(0) = 1, so they are elided.

    def __call__(self, outputs, targets, labels=None):
        rec_out = outputs[self.keys.index('rec')]
        mean = outputs[self.keys.index('mean')]
        logvar = outputs[self.keys.index('log-var')]
        z = outputs[self.keys.index('z')]
        zctx = outputs[self.keys.index('z-context')]

        metrics = vae_loss_metrics(rec_out, targets, mean, logvar, z, zctx)

        losses = {
            'Reconstruction': metrics[0],
            'KLD': metrics[1],
            'Contrast': metrics[2],
        }
        if self.semantic_dim > 0:
            losses['Align'] = metrics[3]
        # TODO(synk): the `label is not None and labels is not None` branch
        # (AlignLoss on label-logits vs labels) is not exercised in this setup.

        rec_term = losses['Reconstruction'] * np.exp(self.reconstruction_weight)
        mix_vals = jnp.stack([losses[k] for k in self.order])
        loss = rec_term + jnp.sum(jnp.exp(self.mixer) * mix_vals) + jnp.sum(self.mixer ** 4)

        # Return device scalars; the caller decides when to synchronize.
        return loss, losses


if __name__ == "__main__":
    key = jax.random.PRNGKey(0)
    B, C, H, W = 8, 1, 16, 16       # image: (N, C, H, W)
    D = 32                          # latent dim

    k0, k1, k2, k3, k4, k5 = jax.random.split(key, 6)
    rec     = jax.random.normal(k0, (B, C, H, W), dtype=jnp.float32)
    target  = jax.random.normal(k1, (B, C, H, W), dtype=jnp.float32)
    mean    = jax.random.normal(k2, (B, D), dtype=jnp.float32) * 0.5
    logvar  = jax.random.normal(k3, (B, D), dtype=jnp.float32) * 0.1
    z       = jax.random.normal(k4, (B, D), dtype=jnp.float32)
    zctx    = jax.random.normal(k5, (B, D), dtype=jnp.float32)

    keys = ['rec', 'mean', 'log-var', 'z', 'z-context', 'label']
    config = {'Reconstruction': 1.0, 'KLD': 0.5, 'Contrast': -0.5, 'Align': 0.25}
    vae_loss = VAELossJax(keys, config, semantic_dim=8)

    outputs = [rec, mean, logvar, z, zctx, None]
    loss, loss_dict = vae_loss(outputs, target, labels=None)
    loss = jax.block_until_ready(loss)

    # ---- pure-JAX reference check ----
    rf, tf_ = rec.reshape(B, -1), target.reshape(B, -1)
    ref_mse = jnp.mean((rf - tf_) ** 2)
    ref_kld = jnp.mean(jnp.sum((mean ** 2 + jnp.exp(logvar) - logvar - 1.0) * 0.5, axis=1))
    Cm = jnp.abs(z @ z.T)
    ref_con = (1.0 - jnp.trace(Cm) / jnp.sum(Cm)) * np.log(D + B)
    nrm = jnp.sqrt(jnp.sum(z ** 2, 1) * jnp.sum(zctx ** 2, 1))
    ref_ali = 1.0 - jnp.mean(jnp.sum((jnp.tanh(z) * zctx) ** 2, 1) / nrm)
    assert np.allclose(float(loss_dict['Reconstruction']), float(ref_mse), rtol=1e-5, atol=1e-5)
    assert np.allclose(float(loss_dict['KLD']),            float(ref_kld), rtol=1e-5, atol=1e-5)
    assert np.allclose(float(loss_dict['Contrast']),       float(ref_con), rtol=1e-5, atol=1e-5)
    assert np.allclose(float(loss_dict['Align']),          float(ref_ali), rtol=1e-4, atol=1e-5)
    assert np.isfinite(float(loss)), "loss is not finite"
    assert all(np.isfinite(float(v)) for v in loss_dict.values())

    # ---- extra check: awkward (non-slab-aligned) image size exercises the
    # padding path and both parallel chunks with real data ----
    k6, k7 = jax.random.split(k5)
    rec2 = jax.random.normal(k6, (4, 3, 40, 40), dtype=jnp.float32)
    tgt2 = jax.random.normal(k7, (4, 3, 40, 40), dtype=jnp.float32)
    m2 = vae_loss_metrics(rec2, tgt2, mean, logvar, z, zctx)
    m2 = jax.block_until_ready(m2)
    ref_mse2 = jnp.mean((rec2 - tgt2) ** 2)
    assert np.allclose(float(m2[0]), float(ref_mse2), rtol=1e-5, atol=1e-5)

    print("KERNEL_OK")
</pallas_src>

<mosaic_0001>
module attributes {stable_mosaic.version = 11 : i64} {
  func.func @_mse_partial_kernel(%arg0: i32, %arg1: i32, %arg2: memref<1x8x1024xf32, #tpu.memory_space<vmem>>, %arg3: memref<1x8x1024xf32, #tpu.memory_space<vmem>>, %arg4: memref<1x8x1024xf32, #tpu.memory_space<vmem>>) attributes {dimension_semantics = [#tpu.dimension_semantics<parallel>, #tpu.dimension_semantics<arbitrary>], iteration_bounds = array<i64: 2, 1>, scalar_prefetch = 0 : i64, scratch_operands = 0 : i64, tpu.core_type = #tpu.core_type<tc>, window_params = [{transform_indices = @transform_0, window_bounds = array<i64: 1, 8, 1024>}, {transform_indices = @transform_1, window_bounds = array<i64: 1, 8, 1024>}, {transform_indices = @transform_2, window_bounds = array<i64: 1, 8, 1024>}]} {
    %c0_i32 = arith.constant 0 : i32
    %0 = arith.cmpi eq, %arg1, %c0_i32 : i32
    %1 = arith.extui %0 : i1 to i32
    %c0_i32_0 = arith.constant 0 : i32
    %2 = arith.cmpi ne, %1, %c0_i32_0 : i32
    scf.if %2 {
      %cst_12 = arith.constant 0.000000e+00 : f32
      %14 = vector.broadcast %cst_12 : f32 to vector<8x1024xf32>
      %c0_13 = arith.constant 0 : index
      %c0_14 = arith.constant 0 : index
      %c0_15 = arith.constant 0 : index
      %15 = vector.load %arg4[%c0_13, %c0_14, %c0_15] : memref<1x8x1024xf32, #tpu.memory_space<vmem>>, vector<1x8x1024xf32>
      %16 = vector.shape_cast %15 : vector<1x8x1024xf32> to vector<8x1024xf32>
      %17 = vector.shape_cast %14 : vector<8x1024xf32> to vector<1x8x1024xf32>
      tpu.vector_store %arg4[%c0_13, %c0_14, %c0_15], %17 {strides = array<i32>} : memref<1x8x1024xf32, #tpu.memory_space<vmem>>, vector<1x8x1024xf32>,
    } else {
    }
    %c0 = arith.constant 0 : index
    %c0_1 = arith.constant 0 : index
    %c0_2 = arith.constant 0 : index
    %3 = vector.load %arg2[%c0, %c0_1, %c0_2] : memref<1x8x1024xf32, #tpu.memory_space<vmem>>, vector<1x8x1024xf32>
    %c0_3 = arith.constant 0 : index
    %c0_4 = arith.constant 0 : index
    %c0_5 = arith.constant 0 : index
    %4 = vector.load %arg3[%c0_3, %c0_4, %c0_5] : memref<1x8x1024xf32, #tpu.memory_space<vmem>>, vector<1x8x1024xf32>
    %5 = arith.subf %3, %4 : vector<1x8x1024xf32>
    %c0_6 = arith.constant 0 : index
    %c0_7 = arith.constant 0 : index
    %c0_8 = arith.constant 0 : index
    %6 = vector.load %arg4[%c0_6, %c0_7, %c0_8] : memref<1x8x1024xf32, #tpu.memory_space<vmem>>, vector<1x8x1024xf32>
    %7 = vector.shape_cast %6 : vector<1x8x1024xf32> to vector<8x1024xf32>
    %8 = arith.mulf %5, %5 : vector<1x8x1024xf32>
    %cst = arith.constant dense<0.000000e+00> : vector<8x1024xf32>
    %9 = vector.multi_reduction <add>, %8, %cst [0] : vector<1x8x1024xf32> to vector<8x1024xf32>
    %10 = arith.addf %7, %9 : vector<8x1024xf32>
    %c0_9 = arith.constant 0 : index
    %c0_10 = arith.constant 0 : index
    %c0_11 = arith.constant 0 : index
    %11 = vector.load %arg4[%c0_9, %c0_10, %c0_11] : memref<1x8x1024xf32, #tpu.memory_space<vmem>>, vector<1x8x1024xf32>
    %12 = vector.shape_cast %11 : vector<1x8x1024xf32> to vector<8x1024xf32>
    %13 = vector.shape_cast %10 : vector<8x1024xf32> to vector<1x8x1024xf32>
    tpu.vector_store %arg4[%c0_9, %c0_10, %c0_11], %13 {strides = array<i32>} : memref<1x8x1024xf32, #tpu.memory_space<vmem>>, vector<1x8x1024xf32>,
    return
  }
  func.func @transform_0(%arg0: i32, %arg1: i32) -> (i32, i32, i32) {
    %c1_i32 = arith.constant 1 : i32
    %0 = arith.muli %arg0, %c1_i32 : i32
    %1 = arith.addi %0, %arg1 : i32
    %c0_i32 = arith.constant 0 : i32
    %c0_i32_0 = arith.constant 0 : i32
    %c0_i32_1 = arith.constant 0 : i32
    return %1, %c0_i32, %c0_i32_0 : i32, i32, i32
  }
  func.func @transform_1(%arg0: i32, %arg1: i32) -> (i32, i32, i32) {
    %c1_i32 = arith.constant 1 : i32
    %0 = arith.muli %arg0, %c1_i32 : i32
    %1 = arith.addi %0, %arg1 : i32
    %c0_i32 = arith.constant 0 : i32
    %c0_i32_0 = arith.constant 0 : i32
    %c0_i32_1 = arith.constant 0 : i32
    return %1, %c0_i32, %c0_i32_0 : i32, i32, i32
  }
  func.func @transform_2(%arg0: i32, %arg1: i32) -> (i32, i32, i32) {
    %c0_i32 = arith.constant 0 : i32
    %c0_i32_0 = arith.constant 0 : i32
    %c0_i32_1 = arith.constant 0 : i32
    return %arg0, %c0_i32, %c0_i32_0 : i32, i32, i32
  }
}

</mosaic_0001>

<llo_original>
// kernel: tpu_custom_call.1
$region0: #{tpu_custom_call.1}
  #allocation0 [shape = 'u32[]', space=smem, size = 0x4, offset = 0x4, fixed_abs, tag = 'smem constant byte address 0x4 - core index']
  #allocation1 [shape = 'u32[72,128]{1,0:T(1,128)}', space=vmem, size = 0x9000, scoped, tag = 'internal scratch']
  %s0 = inlined_call_operand.hbm [shape: f32[2,8,1024], index: 0, kind: input, shape index: {}]
  %s1 = inlined_call_operand.hbm [shape: f32[2,8,1024], index: 1, kind: input, shape index: {}]
  %s2 = inlined_call_operand.hbm [shape: f32[2,8,1024], index: 2, kind: output, shape index: {}]
  %s3 = sld [smem:[#allocation0]]
  $region53: #{tpu_custom_call.1} parent=0
    _
  %s5 = ssub.s32 1, %s3
  %s6 = scalar_select 0, %s5, %s3
  $region1: #{tpu_custom_call.1} parent=0
    #allocation2 [shape = 'u8[65536]{0}', space=vmem, size = 0x10000, scoped, tag = 'input window, operand 0']
    #allocation3 [shape = 's32[2]{0}', space=sflag, size = 0x8, scoped, tag = 'scoped memory for tpu_custom_call.1']
    #allocation4 [shape = 's32[2]{0}', space=sflag, size = 0x8, scoped, tag = 'scoped memory for tpu_custom_call.1']
    #allocation5 [shape = 'u8[65536]{0}', space=vmem, size = 0x10000, scoped, tag = 'input window, operand 1']
    #allocation6 [shape = 's32[2]{0}', space=sflag, size = 0x8, scoped, tag = 'scoped memory for tpu_custom_call.1']
    #allocation7 [shape = 'u8[65536]{0}', space=vmem, size = 0x10000, scoped, tag = 'output window, operand 0']
    %7 = vsyncpa [#allocation3], 0
    %s8 = scalar_lea.sflag [#allocation3], 1
    %9 = vsyncpa %s8, 0
    %10 = vsyncpa [#allocation6], 0
    %s11 = scalar_lea.sflag [#allocation6], 1
    %12 = vsyncpa %s11, 0
    %13 = vsyncpa [#allocation4], 0
    %s14 = scalar_lea.sflag [#allocation4], 1
    %15 = vsyncpa %s14, 0
    loop: start=0, step=1, limit=4
    $region2: #{tpu_custom_call.1} parent=1 // loop_pre_header
      _
    $region3: #{tpu_custom_call.1} parent=1 // loop_header
      %s17 = sphi 0, %s21
      %p18 = scmp.ge.s32.totalorder %s17, 4
      %s24 = sphi 0, %s36
      %s25 = sphi 0, %s32
      %s26 = sphi 0, %s24
      %s27 = sphi 0, %s25
      %s28 = sphi 0, %s26
      %s29 = sphi 0, %s27
      %s41 = sphi 0, %s43
      %s44 = sphi 0, %s41
      %s45 = sphi 0, %s44
      %s61 = sphi 0, %s45
      %s69 = sphi 0, %s71
      %s72 = sphi 0, %s69
      %s73 = sphi 0, %s72
      %s89 = sphi 0, %s73
      %s95 = sphi 0, %s97
      %s98 = sphi 0, %s95
      %s99 = sphi 0, %s98
      %s115 = sphi 0, %s99
    $region4: #{tpu_custom_call.1} parent=1 // loop_header_branch
      %20 = sbr.rel (%p18) target = $region8
    $region5: #{tpu_custom_call.1} parent=1 // loop_body
      %s22 = ssub.s32 %s17, 1
      %s23 = ssub.s32 %s17, 2
      %s30 = sadd.s32 1, %s25
      %p31 = scmp.ge.s32.totalorder %s30, 1
      %s32 = scalar_select %p31, 0, %s30
      %s33 = sadd.s32 1, %s24
      %s34 = scalar_select %p31, %s33, %s24
      %p35 = scmp.ge.s32.totalorder %s34, 2
      %s36 = scalar_select %p35, 0, %s34
      %s37 = sadd.s32 %s24, %s25
      %s38 = sadd.s32 %s36, %s32
      %s39 = ssub.s32 %s37, %s38
      %p40 = scmp.eq.s32.totalorder %s39, 0
      %s42 = sadd.s32 %s41, 1
      %s43 = scalar_select %p40, %s41, %s42
      %p46 = pneg %p40
      %p47 = scmp.eq.s32.totalorder %s17, 1
      %p48 = por %p46, %p47
      %p49 = scmp.ne.s32.totalorder %s41, %s44
      %p50 = scmp.eq.s32.totalorder %s17, 0
      %p51 = por %p49, %p50
      %p52 = scmp.ne.s32.totalorder %s41, %s44
      %p53 = scmp.eq.s32.totalorder %s22, 1
      %p54 = por %p52, %p53
      %p55 = scmp.ne.s32.totalorder %s44, %s45
      %p56 = scmp.eq.s32.totalorder %s22, 0
      %p57 = por %p55, %p56
      %p58 = scmp.ne.s32.totalorder %s44, %s45
      %p59 = scmp.eq.s32.totalorder %s23, 1
      %p60 = por %p58, %p59
      %p62 = scmp.ne.s32.totalorder %s45, %s61
      %p63 = scmp.eq.s32.totalorder %s23, 0
      %p64 = por %p62, %p63
      %s65 = sadd.s32 %s24, %s25
      %s66 = sadd.s32 %s36, %s32
      %s67 = ssub.s32 %s65, %s66
      %p68 = scmp.eq.s32.totalorder %s67, 0
      %s70 = sadd.s32 %s69, 1
      %s71 = scalar_select %p68, %s69, %s70
      %p74 = pneg %p68
      %p75 = scmp.eq.s32.totalorder %s17, 1
      %p76 = por %p74, %p75
      %p77 = scmp.ne.s32.totalorder %s69, %s72
      %p78 = scmp.eq.s32.totalorder %s17, 0
      %p79 = por %p77, %p78
      %p80 = scmp.ne.s32.totalorder %s69, %s72
      %p81 = scmp.eq.s32.totalorder %s22, 1
      %p82 = por %p80, %p81
      %p83 = scmp.ne.s32.totalorder %s72, %s73
      %p84 = scmp.eq.s32.totalorder %s22, 0
      %p85 = por %p83, %p84
      %p86 = scmp.ne.s32.totalorder %s72, %s73
      %p87 = scmp.eq.s32.totalorder %s23, 1
      %p88 = por %p86, %p87
      %p90 = scmp.ne.s32.totalorder %s73, %s89
      %p91 = scmp.eq.s32.totalorder %s23, 0
      %p92 = por %p90, %p91
      %s93 = ssub.s32 %s24, %s36
      %p94 = scmp.eq.s32.totalorder %s93, 0
      %s96 = sadd.s32 %s95, 1
      %s97 = scalar_select %p94, %s95, %s96
      %p100 = pneg %p94
      %p101 = scmp.eq.s32.totalorder %s17, 1
      %p102 = por %p100, %p101
      %p103 = scmp.ne.s32.totalorder %s95, %s98
      %p104 = scmp.eq.s32.totalorder %s17, 0
      %p105 = por %p103, %p104
      %p106 = scmp.ne.s32.totalorder %s95, %s98
      %p107 = scmp.eq.s32.totalorder %s22, 1
      %p108 = por %p106, %p107
      %p109 = scmp.ne.s32.totalorder %s98, %s99
      %p110 = scmp.eq.s32.totalorder %s22, 0
      %p111 = por %p109, %p110
      %p112 = scmp.ne.s32.totalorder %s98, %s99
      %p113 = scmp.eq.s32.totalorder %s23, 1
      %p114 = por %p112, %p113
      %p116 = scmp.ne.s32.totalorder %s99, %s115
      %p117 = scmp.eq.s32.totalorder %s23, 0
      %p118 = por %p116, %p117
      %p119 = scmp.le.s32.totalorder 1, %s17
      %p120 = scmp.lt.s32.totalorder %s17, 3
      %p121 = pnand %p119, %p120
      %p122 = pneg %p121
      // Predicated region
      $region9: #{tpu_custom_call.1} parent=5 // pred_check
        _
      $region10: #{tpu_custom_call.1} parent=5 // pred_check_branch
        %124 = sbr.rel (%p121) target = $region12
      $region11: #{tpu_custom_call.1} parent=5 // pred_region
        %s125 = ssub.s32 %s17, 1
      $region12: #{tpu_custom_call.1} parent=5 // pred_fallthru
        _
      %p126 = scmp.lt.s32.totalorder %s17, 2
      // Predicated region
      $region13: #{tpu_custom_call.1} parent=5 // pred_check
        %p127 = pneg %p126
      $region14: #{tpu_custom_call.1} parent=5 // pred_check_branch
        %129 = sbr.rel (%p127) target = $region16
      $region15: #{tpu_custom_call.1} parent=5 // pred_region
        // Predicated region
        $region17: #{tpu_custom_call.1} parent=15 // pred_check
          %p130 = pneg %p51
        $region18: #{tpu_custom_call.1} parent=15 // pred_check_branch
          %132 = sbr.rel (%p130) target = $region20
        $region19: #{tpu_custom_call.1} parent=15 // pred_region
          %s133 = sand.u32 %s41, 1
          %s134 = scalar_lea.sflag [#allocation3], %s133
          %s135 = sand.u32 %s41, 1
          %s136 = smul.addr %s135, 64
          %s137 = scalar_lea.vmem [#allocation2], %s136
          %s138 = sadd.s32 %s24, %s25
          %140 = vsyncadd %s134, 0
          %s141 = smul.addr %s138, 8
          %s142 = smul.addr %s141, 8
          %s143 = scalar_lea.hbm %s0, %s142
          %s145 = sshll.u32 %s143, 4
          %s146 = int_to_ptr.hbm [resolvable:$true] %s145
          %s147 = sshll.u32 %s137, 4
          %s148 = int_to_ptr.vmem [resolvable:$true] %s147
          %150 = dma.hbm_to_vmem [thread:$0]  %s146, 1024, %s148, %s134
        $region20: #{tpu_custom_call.1} parent=15 // pred_fallthru
          _
        // Predicated region
        $region21: #{tpu_custom_call.1} parent=15 // pred_check
          %p151 = pneg %p79
        $region22: #{tpu_custom_call.1} parent=15 // pred_check_branch
          %153 = sbr.rel (%p151) target = $region24
        $region23: #{tpu_custom_call.1} parent=15 // pred_region
          %s154 = sand.u32 %s69, 1
          %s155 = scalar_lea.sflag [#allocation6], %s154
          %s156 = sand.u32 %s69, 1
          %s157 = smul.addr %s156, 64
          %s158 = scalar_lea.vmem [#allocation5], %s157
          %s159 = sadd.s32 %s24, %s25
          %161 = vsyncadd %s155, 0
          %s162 = smul.addr %s159, 8
          %s163 = smul.addr %s162, 8
          %s164 = scalar_lea.hbm %s1, %s163
          %s166 = sshll.u32 %s164, 4
          %s167 = int_to_ptr.hbm [resolvable:$true] %s166
          %s168 = sshll.u32 %s158, 4
          %s169 = int_to_ptr.vmem [resolvable:$true] %s168
          %171 = dma.hbm_to_vmem [thread:$0]  %s167, 1024, %s169, %s155
        $region24: #{tpu_custom_call.1} parent=15 // pred_fallthru
          _
      $region16: #{tpu_custom_call.1} parent=5 // pred_fallthru
        _
      %p172 = scmp.le.s32.totalorder 1, %s17
      %p173 = scmp.lt.s32.totalorder %s17, 3
      %p174 = pnand %p172, %p173
      %p175 = pneg %p174
      // Predicated region
      $region25: #{tpu_custom_call.1} parent=5 // pred_check
        _
      $region26: #{tpu_custom_call.1} parent=5 // pred_check_branch
        %177 = sbr.rel (%p174) target = $region28
      $region27: #{tpu_custom_call.1} parent=5 // pred_region
        %s178 = ssub.s32 %s17, 1
        %s179 = sand.u32 %s44, 1
        %s180 = scalar_lea.sflag [#allocation3], %s179
        %s181 = sand.u32 %s44, 1
        %s182 = smul.addr %s181, 64
        %s183 = scalar_lea.vmem [#allocation2], %s182
        // Predicated region
        $region29: #{tpu_custom_call.1} parent=27 // pred_check
          %p184 = pneg %p57
        $region30: #{tpu_custom_call.1} parent=27 // pred_check_branch
          %186 = sbr.rel (%p184) target = $region32
        $region31: #{tpu_custom_call.1} parent=27 // pred_region
          %188 = dma.done %s180, 1024
        $region32: #{tpu_custom_call.1} parent=27 // pred_fallthru
          _
        %s189 = sand.u32 %s72, 1
        %s190 = scalar_lea.sflag [#allocation6], %s189
        %s191 = sand.u32 %s72, 1
        %s192 = smul.addr %s191, 64
        %s193 = scalar_lea.vmem [#allocation5], %s192
        // Predicated region
        $region33: #{tpu_custom_call.1} parent=27 // pred_check
          %p194 = pneg %p85
        $region34: #{tpu_custom_call.1} parent=27 // pred_check_branch
          %196 = sbr.rel (%p194) target = $region36
        $region35: #{tpu_custom_call.1} parent=27 // pred_region
          %198 = dma.done %s190, 1024
        $region36: #{tpu_custom_call.1} parent=27 // pred_fallthru
          _
        %s199 = sand.u32 %s44, 1
        %s200 = scalar_lea.sflag [#allocation3], %s199
        %s201 = sand.u32 %s44, 1
        %s202 = smul.addr %s201, 64
        %s203 = scalar_lea.vmem [#allocation2], %s202
        %p204 = pneg %p57
        %p205 = pneg %p54
        %s206 = sand.u32 %s72, 1
        %s207 = scalar_lea.sflag [#allocation6], %s206
        %s208 = sand.u32 %s72, 1
        %s209 = smul.addr %s208, 64
        %s210 = scalar_lea.vmem [#allocation5], %s209
        %p211 = pneg %p85
        %p212 = pneg %p82
        %p213 = pneg %p111
        %p214 = pneg %p108
        %s215 = sand.u32 %s98, 1
        %s216 = scalar_lea.sflag [#allocation4], %s215
        %s217 = sand.u32 %s98, 1
        %s218 = smul.addr %s217, 64
        %s219 = scalar_lea.vmem [#allocation7], %s218
        %s220 = sadd.s32 %s26, %s27
        %s221 = sadd.s32 %s26, %s27
        %p222 = scmp.eq.s32.totalorder %s27, 0
        // Predicated region
        $region37: #{tpu_custom_call.1} parent=27 // pred_check
          %p223 = pneg %p222
        $region38: #{tpu_custom_call.1} parent=27 // pred_check_branch
          %225 = sbr.rel (%p223) target = $region40
        $region39: #{tpu_custom_call.1} parent=27 // pred_region
          %226 = vst [vmem:[%s219] sm:$0xff] 0.0
          %227 = vst [vmem:[%s219 + $0x8] sm:$0xff] 0.0
          %228 = vst [vmem:[%s219 + $0x10] sm:$0xff] 0.0
          %229 = vst [vmem:[%s219 + $0x18] sm:$0xff] 0.0
          %230 = vst [vmem:[%s219 + $0x20] sm:$0xff] 0.0
          %231 = vst [vmem:[%s219 + $0x28] sm:$0xff] 0.0
          %232 = vst [vmem:[%s219 + $0x30] sm:$0xff] 0.0
          %233 = vst [vmem:[%s219 + $0x38] sm:$0xff] 0.0
        $region40: #{tpu_custom_call.1} parent=27 // pred_fallthru
          _
        %v234 = vld [vmem:[%s183] sm:$0xff]
        %v235 = vld [vmem:[%s183 + $0x8] sm:$0xff]
        %v236 = vld [vmem:[%s183 + $0x10] sm:$0xff]
        %v237 = vld [vmem:[%s183 + $0x18] sm:$0xff]
        %v238 = vld [vmem:[%s183 + $0x20] sm:$0xff]
        %v239 = vld [vmem:[%s183 + $0x28] sm:$0xff]
        %v240 = vld [vmem:[%s183 + $0x30] sm:$0xff]
        %v241 = vld [vmem:[%s183 + $0x38] sm:$0xff]
        %v242 = vld [vmem:[%s193] sm:$0xff]
        %v243 = vld [vmem:[%s193 + $0x8] sm:$0xff]
        %v244 = vld [vmem:[%s193 + $0x10] sm:$0xff]
        %v245 = vld [vmem:[%s193 + $0x18] sm:$0xff]
        %v246 = vld [vmem:[%s193 + $0x20] sm:$0xff]
        %v247 = vld [vmem:[%s193 + $0x28] sm:$0xff]
        %v248 = vld [vmem:[%s193 + $0x30] sm:$0xff]
        %v249 = vld [vmem:[%s193 + $0x38] sm:$0xff]
        %v250 = vsub.f32 %v234, %v242
        %v251 = vsub.f32 %v235, %v243
        %v252 = vsub.f32 %v236, %v244
        %v253 = vsub.f32 %v237, %v245
        %v254 = vsub.f32 %v238, %v246
        %v255 = vsub.f32 %v239, %v247
        %v256 = vsub.f32 %v240, %v248
        %v257 = vsub.f32 %v241, %v249
        %v258 = vld [vmem:[%s219] sm:$0xff]
        %v259 = vld [vmem:[%s219 + $0x8] sm:$0xff]
        %v260 = vld [vmem:[%s219 + $0x10] sm:$0xff]
        %v261 = vld [vmem:[%s219 + $0x18] sm:$0xff]
        %v262 = vld [vmem:[%s219 + $0x20] sm:$0xff]
        %v263 = vld [vmem:[%s219 + $0x28] sm:$0xff]
        %v264 = vld [vmem:[%s219 + $0x30] sm:$0xff]
        %v265 = vld [vmem:[%s219 + $0x38] sm:$0xff]
        %v266 = vmul.f32 %v250, %v250
        %v267 = vmul.f32 %v251, %v251
        %v268 = vmul.f32 %v252, %v252
        %v269 = vmul.f32 %v253, %v253
        %v270 = vmul.f32 %v254, %v254
        %v271 = vmul.f32 %v255, %v255
        %v272 = vmul.f32 %v256, %v256
        %v273 = vmul.f32 %v257, %v257
        %v274 = vadd.f32 %v266, 0.0
        %v275 = vadd.f32 %v267, 0.0
        %v276 = vadd.f32 %v268, 0.0
        %v277 = vadd.f32 %v269, 0.0
        %v278 = vadd.f32 %v270, 0.0
        %v279 = vadd.f32 %v271, 0.0
        %v280 = vadd.f32 %v272, 0.0
        %v281 = vadd.f32 %v273, 0.0
        %v282 = vadd.f32 %v258, %v274
        %v283 = vadd.f32 %v259, %v275
        %v284 = vadd.f32 %v260, %v276
        %v285 = vadd.f32 %v261, %v277
        %v286 = vadd.f32 %v262, %v278
        %v287 = vadd.f32 %v263, %v279
        %v288 = vadd.f32 %v264, %v280
        %v289 = vadd.f32 %v265, %v281
        %290 = vst [vmem:[%s219] sm:$0xff] %v282
        %291 = vst [vmem:[%s219 + $0x8] sm:$0xff] %v283
        %292 = vst [vmem:[%s219 + $0x10] sm:$0xff] %v284
        %293 = vst [vmem:[%s219 + $0x18] sm:$0xff] %v285
        %294 = vst [vmem:[%s219 + $0x20] sm:$0xff] %v286
        %295 = vst [vmem:[%s219 + $0x28] sm:$0xff] %v287
        %296 = vst [vmem:[%s219 + $0x30] sm:$0xff] %v288
        %297 = vst [vmem:[%s219 + $0x38] sm:$0xff] %v289
        %s298 = sand.u32 %s98, 1
        %s299 = scalar_lea.sflag [#allocation4], %s298
        %s300 = sand.u32 %s98, 1
        %s301 = smul.addr %s300, 64
        %s302 = scalar_lea.vmem [#allocation7], %s301
        // Predicated region
        $region41: #{tpu_custom_call.1} parent=27 // pred_check
          %p303 = pneg %p108
        $region42: #{tpu_custom_call.1} parent=27 // pred_check_branch
          %305 = sbr.rel (%p303) target = $region44
        $region43: #{tpu_custom_call.1} parent=27 // pred_region
          %307 = vsyncadd %s299, 0
          %s308 = smul.addr %s26, 8
          %s309 = smul.addr %s308, 8
          %s310 = scalar_lea.hbm %s2, %s309
          %s312 = sshll.u32 %s302, 4
          %s313 = int_to_ptr.vmem [resolvable:$true] %s312
          %s314 = sshll.u32 %s310, 4
          %s315 = int_to_ptr.hbm [resolvable:$true] %s314
          %317 = dma.vmem_to_hbm [thread:$0]  %s313, 1024, %s315, %s299
        $region44: #{tpu_custom_call.1} parent=27 // pred_fallthru
          _
      $region28: #{tpu_custom_call.1} parent=5 // pred_fallthru
        _
      %p318 = scmp.le.s32.totalorder 2, %s17
      // Predicated region
      $region45: #{tpu_custom_call.1} parent=5 // pred_check
        %p319 = pneg %p318
      $region46: #{tpu_custom_call.1} parent=5 // pred_check_branch
        %321 = sbr.rel (%p319) target = $region48
      $region47: #{tpu_custom_call.1} parent=5 // pred_region
        %s322 = ssub.s32 %s17, 2
        // Predicated region
        $region49: #{tpu_custom_call.1} parent=47 // pred_check
          %p323 = pneg %p114
        $region50: #{tpu_custom_call.1} parent=47 // pred_check_branch
          %325 = sbr.rel (%p323) target = $region52
        $region51: #{tpu_custom_call.1} parent=47 // pred_region
          %s326 = sand.u32 %s99, 1
          %s327 = scalar_lea.sflag [#allocation4], %s326
          %s328 = sand.u32 %s99, 1
          %s329 = smul.addr %s328, 64
          %s330 = scalar_lea.vmem [#allocation7], %s329
          %332 = dma.done %s327, 1024
        $region52: #{tpu_custom_call.1} parent=47 // pred_fallthru
          _
      $region48: #{tpu_custom_call.1} parent=5 // pred_fallthru
        _
    $region6: #{tpu_custom_call.1} parent=1 // loop_footer
      %s21 = sadd.s32 1, %s17
    $region7: #{tpu_custom_call.1} parent=1 // loop_footer_branch
      %16 = sbr.rel target = $region3
    $region8: #{tpu_custom_call.1} parent=1 // loop_exit
      _
    %333 = vsyncpa [#allocation3], 1
    %s334 = scalar_lea.sflag [#allocation3], 1
    %335 = vsyncpa %s334, 1
    %336 = vsyncpa [#allocation6], 1
    %s337 = scalar_lea.sflag [#allocation6], 1
    %338 = vsyncpa %s337, 1
    %339 = vsyncpa [#allocation4], 1
    %s340 = scalar_lea.sflag [#allocation4], 1
    %341 = vsyncpa %s340, 1

</llo_original>
